<compile_context>
chip_gen: v5e
topology: v5e:2x2
jax: 0.10.0
libtpu: 0.0.40
codegen_flags: <defaults>
</compile_context>

<pallas_src>
import math
from functools import partial

import jax
import jax.numpy as jnp
from jax import lax
from jax.experimental import pallas as pl
from jax.experimental.pallas import tpu as pltpu


# Cast MXU operands to bf16 (keeping f32 accumulation) for 2-4x MXU
# throughput (largest on v5e).  Default False => exact f32 parity with the
# PyTorch module.
USE_BF16_MATMUL = False


def _mx(a):
    return a.astype(jnp.bfloat16) if USE_BF16_MATMUL else a


# ---------------------------------------------------------------------------
# Pallas kernels
# ---------------------------------------------------------------------------
def _linear_kernel(x_ref, w_ref, o_ref):
    # y = x @ W   (qkv_bias=False -> no bias add / zero-bias DMA)
    o_ref[...] = jnp.dot(_mx(x_ref[...]), _mx(w_ref[...]),
                         preferred_element_type=jnp.float32).astype(o_ref.dtype)


def _srconv_ln_kv_kernel(xp_ref, wf_ref, bsr_ref, g_ref, beta_ref, wkv_ref,
                         o_ref):
    # Fused: sr-ratio Conv2d (as patch matmul) + conv bias + LayerNorm(1e-5)
    # + kv projection (no bias).  One kernel, one HBM round trip.
    y = jnp.dot(_mx(xp_ref[...]), _mx(wf_ref[...]),
                preferred_element_type=jnp.float32) + bsr_ref[...]
    mu = jnp.mean(y, axis=-1, keepdims=True)
    var = jnp.mean((y - mu) ** 2, axis=-1, keepdims=True)
    yn = (y - mu) * lax.rsqrt(var + 1e-5) * g_ref[...] + beta_ref[...]
    o_ref[...] = jnp.dot(_mx(yn), _mx(wkv_ref[...]),
                         preferred_element_type=jnp.float32).astype(o_ref.dtype)


def _attn_proj_kernel(q_ref, kv_ref, wp_ref, bp_ref, o_ref, acc_ref, *,
                      num_heads, head_dim):
    # One (batch, q-tile) slice per grid step.
    #   q_ref : (1, TQ, C)   (scale already folded into the q weight)
    #   kv_ref: (1, Nk, 2C)  k at cols [h*d,(h+1)*d), v at cols [C+h*d, ...)
    #   wp_ref: (C, C)   bp_ref: (1, C)   o_ref: (1, TQ, C)
    #   acc_ref: (TQ, C) f32 VMEM scratch accumulator.
    C = num_heads * head_dim
    acc_ref[...] = jnp.broadcast_to(bp_ref[...], acc_ref.shape)   # init = bias
    for h in range(num_heads):                      # static unroll over heads
        lo, hi = h * head_dim, (h + 1) * head_dim
        # Per-head ref slices: views straight into VMEM, no eager full-slab
        # loads of kv / Wproj into vregs.
        qh = q_ref[0, :, lo:hi]                     # (TQ, d)
        kh = kv_ref[0, :, lo:hi]                    # (Nk, d)
        vh = kv_ref[0, :, C + lo:C + hi]            # (Nk, d)
        # q @ k^T without materializing a transpose (contract last dims).
        s = lax.dot_general(_mx(qh), _mx(kh), (((1,), (1,)), ((), ())),
                            preferred_element_type=jnp.float32)   # (TQ, Nk)
        m = jnp.max(s, axis=-1, keepdims=True)
        p = jnp.exp(s - m)
        inv = pl.reciprocal(jnp.sum(p, axis=-1, keepdims=True), approx=True)
        oh = jnp.dot(_mx(p), _mx(vh),
                     preferred_element_type=jnp.float32) * inv     # (TQ, d)
        # concat_h(o_h) @ Wproj  ==  sum_h  o_h @ Wproj[h*d:(h+1)*d, :]
        acc_ref[...] += jnp.dot(_mx(oh), _mx(wp_ref[lo:hi, :]),
                                preferred_element_type=jnp.float32)
    o_ref[0] = acc_ref[...].astype(o_ref.dtype)


# ---------------------------------------------------------------------------
# pallas_call wrappers
# ---------------------------------------------------------------------------
_PAR1 = pltpu.CompilerParams(dimension_semantics=("parallel",))
_PAR2 = pltpu.CompilerParams(dimension_semantics=("parallel", "parallel"))


def pallas_linear(x, w, *, tm=512):
    """Row-tiled (M, K) @ (K, Nout) on the MXU (no bias)."""
    M, K = x.shape
    Nout = w.shape[1]
    TM = min(M, tm)
    return pl.pallas_call(
        _linear_kernel,
        out_shape=jax.ShapeDtypeStruct((M, Nout), x.dtype),
        grid=(pl.cdiv(M, TM),),
        in_specs=[pl.BlockSpec((TM, K), lambda i: (i, 0)),
                  pl.BlockSpec((K, Nout), lambda i: (0, 0))],
        out_specs=pl.BlockSpec((TM, Nout), lambda i: (i, 0)),
        compiler_params=_PAR1,
    )(x, w)


def pallas_srconv_ln_kv(xp, wf, b_sr, gamma, beta, wkv, *, tm=256):
    """Row-tiled fused sr-conv matmul + bias + LayerNorm + kv projection.

    tm=256 keeps the double-buffered (TM, C*sr*sr) input tile within v5e's
    16 MiB default scoped VMEM even at PVT stage-1 sizes (K up to 4096), and
    comfortably within v7x's smaller VMEM.
    """
    M, K = xp.shape
    C = wf.shape[1]
    Nout = wkv.shape[1]
    TM = min(M, tm)
    return pl.pallas_call(
        _srconv_ln_kv_kernel,
        out_shape=jax.ShapeDtypeStruct((M, Nout), xp.dtype),
        grid=(pl.cdiv(M, TM),),
        in_specs=[pl.BlockSpec((TM, K), lambda i: (i, 0)),
                  pl.BlockSpec((K, C), lambda i: (0, 0)),
                  pl.BlockSpec((1, C), lambda i: (0, 0)),
                  pl.BlockSpec((1, C), lambda i: (0, 0)),
                  pl.BlockSpec((1, C), lambda i: (0, 0)),
                  pl.BlockSpec((C, Nout), lambda i: (0, 0))],
        out_specs=pl.BlockSpec((TM, Nout), lambda i: (i, 0)),
        compiler_params=_PAR1,
    )(xp, wf, b_sr.reshape(1, C), gamma.reshape(1, C), beta.reshape(1, C), wkv)


def pallas_attention_proj(q, kv, wproj, bproj, *, num_heads, tq=128):
    """Fused multi-head attention + output projection (+ proj bias).

    q : (B, N, C)  q-projection slab (head h at cols h*d:(h+1)*d)
    kv: (B, Nk, 2C) kv-projection slab (k in [0,C), v in [C,2C))
    """
    B, N, C = q.shape
    Nk = kv.shape[1]
    d = C // num_heads
    TQ = min(N, tq)
    # v7x shards parallel grid axes over 2 TensorCores; make sure there are
    # at least 2 parallel steps when possible.
    if B * ((N + TQ - 1) // TQ) < 2 and TQ % 16 == 0:
        TQ //= 2
    grid = (B, pl.cdiv(N, TQ))
    kern = partial(_attn_proj_kernel, num_heads=num_heads, head_dim=d)
    return pl.pallas_call(
        kern,
        out_shape=jax.ShapeDtypeStruct((B, N, C), q.dtype),
        grid=grid,
        in_specs=[
            pl.BlockSpec((1, TQ, C), lambda b, i: (b, i, 0)),
            # kv block index is constant across q tiles -> DMA'd once per
            # batch and kept resident in VMEM.
            pl.BlockSpec((1, Nk, 2 * C), lambda b, i: (b, 0, 0)),
            pl.BlockSpec((C, C), lambda b, i: (0, 0)),
            pl.BlockSpec((1, C), lambda b, i: (0, 0)),
        ],
        out_specs=pl.BlockSpec((1, TQ, C), lambda b, i: (b, i, 0)),
        scratch_shapes=[pltpu.VMEM((TQ, C), jnp.float32)],
        compiler_params=_PAR2,
    )(q, kv, wproj, bproj.reshape(1, C))


# ---------------------------------------------------------------------------
# One-time parameter prep + full forward (matches PyTorch Attention.forward)
# ---------------------------------------------------------------------------
def prepare_params(params, *, scale, sr_ratio, dim):
    """One-time parameter transforms, kept out of the per-call path:
       - fold the attention scale into the q-projection weight,
       - flatten the sr-conv weight into patch-matmul layout."""
    C = dim
    prep = {"wq": params["wq"] * scale,
            "wkv": params["wkv"],
            "wproj": params["wproj"],
            "bproj": params["bproj"]}
    if sr_ratio > 1:
        sr = sr_ratio
        prep["wf_sr"] = params["w_sr"].reshape(C, C * sr * sr).T   # (C*sr*sr, C)
        prep["b_sr"] = params["b_sr"]
        prep["g_ln"] = params["g_ln"]
        prep["b_ln"] = params["b_ln"]
    return prep


def attention_forward(x, prep, H, W, *, num_heads, sr_ratio):
    B, N, C = x.shape
    x_flat = x.reshape(B * N, C)

    # q projection (scale folded into the weight; qkv_bias=False).
    q = pallas_linear(x_flat, prep["wq"]).reshape(B, N, C)

    if sr_ratio > 1:
        sr = sr_ratio
        Nk = (H // sr) * (W // sr)
        # Conv2d(kernel=stride=sr) == patchify + matmul.  Reshape is metadata
        # only; the transpose is one XLA relayout of the activation.
        # TODO(synk): fold this patchify relayout into the sr-conv kernel via
        # blocked/strided in-kernel loads to save one activation HBM trip.
        xp = x.reshape(B, H // sr, sr, W // sr, sr, C)
        xp = xp.transpose(0, 1, 3, 5, 2, 4).reshape(B * Nk, C * sr * sr)
        # Fused sr-conv + bias + LayerNorm + kv projection (single kernel, no
        # intermediate (B*Nk, C) HBM round trip).
        kv = pallas_srconv_ln_kv(xp, prep["wf_sr"], prep["b_sr"],
                                 prep["g_ln"], prep["b_ln"], prep["wkv"])
    else:
        Nk = N
        # A fused (C, 3C) q+kv matmul was evaluated but costs MORE total HBM
        # traffic here (the packed 3C slab is re-read at 3C width by the
        # attention kernel or must be materialized via slices), so the two
        # lane-dense separate projections are kept.
        kv = pallas_linear(x_flat, prep["wkv"])
    kv = kv.reshape(B, Nk, 2 * C)

    # Fused attention + output projection (proj bias added in-kernel).
    return pallas_attention_proj(q, kv, prep["wproj"], prep["bproj"],
                                 num_heads=num_heads)


# ---------------------------------------------------------------------------
# Pure-JAX reference (mirrors the PyTorch forward exactly)
# ---------------------------------------------------------------------------
def attention_reference(x, params, H, W, *, num_heads, sr_ratio, scale):
    B, N, C = x.shape
    d = C // num_heads
    q = (x @ params["wq"]).reshape(B, N, num_heads, d).transpose(0, 2, 1, 3)
    if sr_ratio > 1:
        sr = sr_ratio
        x_ = x.transpose(0, 2, 1).reshape(B, C, H, W)
        xp = x_.reshape(B, C, H // sr, sr, W // sr, sr)
        xp = xp.transpose(0, 2, 4, 1, 3, 5).reshape(B, -1, C * sr * sr)
        wf = params["w_sr"].reshape(C, -1).T
        x_ = xp @ wf + params["b_sr"]
        mu = x_.mean(-1, keepdims=True)
        var = ((x_ - mu) ** 2).mean(-1, keepdims=True)
        x_ = (x_ - mu) / jnp.sqrt(var + 1e-5) * params["g_ln"] + params["b_ln"]
        src = x_
    else:
        src = x
    Nk = src.shape[1]
    kv = (src @ params["wkv"]).reshape(B, Nk, 2, num_heads, d).transpose(2, 0, 3, 1, 4)
    k, v = kv[0], kv[1]
    attn = jnp.einsum("bhqd,bhkd->bhqk", q, k) * scale
    attn = jax.nn.softmax(attn, axis=-1)
    o = jnp.einsum("bhqk,bhkd->bhqd", attn, v)
    o = o.transpose(0, 2, 1, 3).reshape(B, N, C)
    return o @ params["wproj"] + params["bproj"]


# ---------------------------------------------------------------------------
if __name__ == "__main__":
    B, H, W = 2, 8, 8
    N = H * W
    dim = 32
    num_heads = 4
    head_dim = dim // num_heads
    scale = head_dim ** (-0.5)

    key = jax.random.PRNGKey(0)
    keys = jax.random.split(key, 8)

    # deterministic synthetic parameters (matching nn.Module __init__ shapes)
    params = {
        # nn.Linear stores weight as (out, in); we keep (in, out) for x @ W
        "wq": jax.random.normal(keys[0], (dim, dim), jnp.float32) * 0.02,
        "wkv": jax.random.normal(keys[1], (dim, 2 * dim), jnp.float32) * 0.02,
        "wproj": jax.random.normal(keys[2], (dim, dim), jnp.float32) * 0.02,
        "bproj": jnp.zeros((dim,), jnp.float32),
        # sr conv: (C_out, C_in, sr, sr), std = sqrt(2 / fan_out)
        "w_sr": jax.random.normal(keys[3], (dim, dim, 2, 2), jnp.float32)
                * math.sqrt(2.0 / (2 * 2 * dim)),
        "b_sr": jnp.zeros((dim,), jnp.float32),
        "g_ln": jnp.ones((dim,), jnp.float32),
        "b_ln": jnp.zeros((dim,), jnp.float32),
    }

    x = jax.random.normal(keys[4], (B, N, dim), jnp.float32)

    # Exercise both branches of the module: sr_ratio > 1 and sr_ratio == 1.
    for sr_ratio in (2, 1):
        prep = prepare_params(params, scale=scale, sr_ratio=sr_ratio, dim=dim)
        out = attention_forward(x, prep, H, W, num_heads=num_heads,
                                sr_ratio=sr_ratio)
        out = jax.block_until_ready(out)
        ref = attention_reference(x, params, H, W, num_heads=num_heads,
                                  sr_ratio=sr_ratio, scale=scale)
        assert out.shape == (B, N, dim)
        assert bool(jnp.allclose(out, ref, atol=1e-2, rtol=1e-2)), (
            f"sr_ratio={sr_ratio}: max diff "
            f"{float(jnp.max(jnp.abs(out - ref)))}")

    print("KERNEL_OK")
</pallas_src>

<mosaic_0001>
module attributes {stable_mosaic.version = 11 : i64} {
  func.func @_linear_kernel(%arg0: i32, %arg1: memref<128x32xf32, #tpu.memory_space<vmem>>, %arg2: memref<32x32xf32, #tpu.memory_space<vmem>>, %arg3: memref<128x32xf32, #tpu.memory_space<vmem>>) attributes {dimension_semantics = [#tpu.dimension_semantics<parallel>], iteration_bounds = array<i64: 1>, scalar_prefetch = 0 : i64, scratch_operands = 0 : i64, tpu.core_type = #tpu.core_type<tc>, window_params = [{transform_indices = @transform_0, window_bounds = array<i64: 128, 32>}, {pipeline_mode = #tpu.pipeline_mode<synchronous>, transform_indices = @transform_1, window_bounds = array<i64: 32, 32>}, {transform_indices = @transform_2, window_bounds = array<i64: 128, 32>}]} {
    %c0 = arith.constant 0 : index
    %c0_0 = arith.constant 0 : index
    %0 = vector.load %arg1[%c0, %c0_0] : memref<128x32xf32, #tpu.memory_space<vmem>>, vector<128x32xf32>
    %c0_1 = arith.constant 0 : index
    %c0_2 = arith.constant 0 : index
    %1 = vector.load %arg2[%c0_1, %c0_2] : memref<32x32xf32, #tpu.memory_space<vmem>>, vector<32x32xf32>
    %cst = arith.constant dense<0.000000e+00> : vector<128x32xf32>
    %2 = tpu.matmul %0, %1, %cst {dimension_numbers = #tpu.dot_dimension_numbers<[1], [0], [0], [1], [0, 0, 1, 1], [], []>} : vector<128x32xf32>, vector<32x32xf32>, vector<128x32xf32> -> vector<128x32xf32>
    %c0_3 = arith.constant 0 : index
    %c0_4 = arith.constant 0 : index
    %3 = vector.load %arg3[%c0_3, %c0_4] : memref<128x32xf32, #tpu.memory_space<vmem>>, vector<128x32xf32>
    tpu.vector_store %arg3[%c0_3, %c0_4], %2 {strides = array<i32>} : memref<128x32xf32, #tpu.memory_space<vmem>>, vector<128x32xf32>,
    return
  }
  func.func @transform_0(%arg0: i32) -> (i32, i32) {
    %c0_i32 = arith.constant 0 : i32
    %c0_i32_0 = arith.constant 0 : i32
    return %arg0, %c0_i32 : i32, i32
  }
  func.func @transform_1(%arg0: i32) -> (i32, i32) {
    %c0_i32 = arith.constant 0 : i32
    %c0_i32_0 = arith.constant 0 : i32
    %c0_i32_1 = arith.constant 0 : i32
    return %c0_i32, %c0_i32_0 : i32, i32
  }
  func.func @transform_2(%arg0: i32) -> (i32, i32) {
    %c0_i32 = arith.constant 0 : i32
    %c0_i32_0 = arith.constant 0 : i32
    return %arg0, %c0_i32 : i32, i32
  }
}

</mosaic_0001>

<llo_original>
// kernel: tpu_custom_call.1
$region0: #{tpu_custom_call.1}
  #allocation0 [shape = 'u32[]', space=smem, size = 0x4, offset = 0x4, fixed_abs, tag = 'smem constant byte address 0x4 - core index']
  #allocation1 [shape = 'u32[72,128]{1,0:T(1,128)}', space=vmem, size = 0x9000, scoped, tag = 'internal scratch']
  %s0 = inlined_call_operand.vmem [shape: f32[128,32], index: 0, kind: input, shape index: {}]
  %s1 = inlined_call_operand.vmem [shape: f32[32,32], index: 1, kind: input, shape index: {}]
  %s2 = inlined_call_operand.vmem [shape: f32[128,32], index: 2, kind: output, shape index: {}]
  %s3 = sld [smem:[#allocation0]]
  $region18: #{tpu_custom_call.1} parent=0
    _
  %s5 = ssub.s32 1, %s3
  %s6 = scalar_select 0, %s5, %s3
  // Predicated region
  $region2: #{tpu_custom_call.1} parent=0 // pred_check
    _
  $region3: #{tpu_custom_call.1} parent=0 // pred_check_branch
    %8 = sbr.rel (0) target = $region5
  $region4: #{tpu_custom_call.1} parent=0 // pred_region
    _
  $region5: #{tpu_custom_call.1} parent=0 // pred_fallthru
    _
  // Predicated region
  $region6: #{tpu_custom_call.1} parent=0 // pred_check
    _
  $region7: #{tpu_custom_call.1} parent=0 // pred_check_branch
    %10 = sbr.rel (0) target = $region9
  $region8: #{tpu_custom_call.1} parent=0 // pred_region
    _
  $region9: #{tpu_custom_call.1} parent=0 // pred_fallthru
    _
  %v11 = vld [vmem:[%s0] sm:$0xff]
  %v12 = vld [vmem:[%s0 + $0x8] sm:$0xff]
  %v13 = vld [vmem:[%s0 + $0x10] sm:$0xff]
  %v14 = vld [vmem:[%s0 + $0x18] sm:$0xff]
  %v15 = vld [vmem:[%s0 + $0x20] sm:$0xff]
  %v16 = vld [vmem:[%s0 + $0x28] sm:$0xff]
  %v17 = vld [vmem:[%s0 + $0x30] sm:$0xff]
  %v18 = vld [vmem:[%s0 + $0x38] sm:$0xff]
  %v19 = vld [vmem:[%s0 + $0x40] sm:$0xff]
  %v20 = vld [vmem:[%s0 + $0x48] sm:$0xff]
  %v21 = vld [vmem:[%s0 + $0x50] sm:$0xff]
  %v22 = vld [vmem:[%s0 + $0x58] sm:$0xff]
  %v23 = vld [vmem:[%s0 + $0x60] sm:$0xff]
  %v24 = vld [vmem:[%s0 + $0x68] sm:$0xff]
  %v25 = vld [vmem:[%s0 + $0x70] sm:$0xff]
  %v26 = vld [vmem:[%s0 + $0x78] sm:$0xff]
  %v27 = vld [vmem:[%s1] sm:$0xff]
  %v28 = vld [vmem:[%s1 + $0x8] sm:$0xff]
  %v29 = vld [vmem:[%s1 + $0x10] sm:$0xff]
  %v30 = vld [vmem:[%s1 + $0x18] sm:$0xff]
  %vm31 = vcmask 261120
  %v33 = vsel %vm31, %v11, 0
  %v36 = vsel %vm31, %v12, 0
  %v39 = vsel %vm31, %v13, 0
  %v42 = vsel %vm31, %v14, 0
  %v45 = vsel %vm31, %v15, 0
  %v48 = vsel %vm31, %v16, 0
  %v51 = vsel %vm31, %v17, 0
  %v54 = vsel %vm31, %v18, 0
  %v57 = vsel %vm31, %v19, 0
  %v60 = vsel %vm31, %v20, 0
  %v63 = vsel %vm31, %v21, 0
  %v66 = vsel %vm31, %v22, 0
  %v69 = vsel %vm31, %v23, 0
  %v72 = vsel %vm31, %v24, 0
  %v75 = vsel %vm31, %v25, 0
  %v78 = vsel %vm31, %v26, 0
  %80 = vmatpush.msra.mxu0 0.0
  %81 = vmatpush.msra.mxu0 0.0
  %82 = vmatpush.msra.mxu0 0.0
  %83 = vmatpush.msra.mxu0 0.0
  %84 = vmatpush.msra.mxu0 0.0
  %85 = vmatpush.msra.mxu0 0.0
  %86 = vmatpush.msra.mxu0 0.0
  %87 = vmatpush.msra.mxu0 0.0
  %88 = vmatpush.msra.mxu0 0.0
  %89 = vmatpush.msra.mxu0 0.0
  %90 = vmatpush.msra.mxu0 0.0
  %91 = vmatpush.msra.mxu0 0.0
  %92 = vmatpush.msra.mxu0 %v30
  %93 = vmatpush.msra.mxu0 %v29
  %94 = vmatpush.msra.mxu0 %v28
  %95 = vmatpush.msra.mxu0 %v27
  %96 = vmatmul.f32.gmra.mxu0 %v33
  %v97 = vpop.f32.mrf.mxu0
  %v98 = vadd.f32 0.0, %v97
  %99 = vmatmul.f32.gmra.mxu0 %v36
  %v100 = vpop.f32.mrf.mxu0
  %v101 = vadd.f32 0.0, %v100
  %102 = vmatmul.f32.gmra.mxu0 %v39
  %v103 = vpop.f32.mrf.mxu0
  %v104 = vadd.f32 0.0, %v103
  %105 = vmatmul.f32.gmra.mxu0 %v42
  %v106 = vpop.f32.mrf.mxu0
  %v107 = vadd.f32 0.0, %v106
  %108 = vmatmul.f32.gmra.mxu0 %v45
  %v109 = vpop.f32.mrf.mxu0
  %v110 = vadd.f32 0.0, %v109
  %111 = vmatmul.f32.gmra.mxu0 %v48
  %v112 = vpop.f32.mrf.mxu0
  %v113 = vadd.f32 0.0, %v112
  %114 = vmatmul.f32.gmra.mxu0 %v51
  %v115 = vpop.f32.mrf.mxu0
  %v116 = vadd.f32 0.0, %v115
  %117 = vmatmul.f32.gmra.mxu0 %v54
  %v118 = vpop.f32.mrf.mxu0
  %v119 = vadd.f32 0.0, %v118
  %120 = vmatmul.f32.gmra.mxu0 %v57
  %v121 = vpop.f32.mrf.mxu0
  %v122 = vadd.f32 0.0, %v121
  %123 = vmatmul.f32.gmra.mxu0 %v60
  %v124 = vpop.f32.mrf.mxu0
  %v125 = vadd.f32 0.0, %v124
  %126 = vmatmul.f32.gmra.mxu0 %v63
  %v127 = vpop.f32.mrf.mxu0
  %v128 = vadd.f32 0.0, %v127
  %129 = vmatmul.f32.gmra.mxu0 %v66
  %v130 = vpop.f32.mrf.mxu0
  %v131 = vadd.f32 0.0, %v130
  %132 = vmatmul.f32.gmra.mxu0 %v69
  %v133 = vpop.f32.mrf.mxu0
  %v134 = vadd.f32 0.0, %v133
  %135 = vmatmul.f32.gmra.mxu0 %v72
  %v136 = vpop.f32.mrf.mxu0
  %v137 = vadd.f32 0.0, %v136
  %138 = vmatmul.f32.gmra.mxu0 %v75
  %v139 = vpop.f32.mrf.mxu0
  %v140 = vadd.f32 0.0, %v139
  %141 = vmatmul.f32.gmra.mxu0 %v78
  %v142 = vpop.f32.mrf.mxu0
  %v143 = vadd.f32 0.0, %v142
  %144 = vdwg.mxu0
  %145 = vst.msk [vmem:[%s2] sm:$0xff] %vm31, %v98
  %146 = vst.msk [vmem:[%s2 + $0x8] sm:$0xff] %vm31, %v101
  %147 = vst.msk [vmem:[%s2 + $0x10] sm:$0xff] %vm31, %v104
  %148 = vst.msk [vmem:[%s2 + $0x18] sm:$0xff] %vm31, %v107
  %149 = vst.msk [vmem:[%s2 + $0x20] sm:$0xff] %vm31, %v110
  %150 = vst.msk [vmem:[%s2 + $0x28] sm:$0xff] %vm31, %v113
  %151 = vst.msk [vmem:[%s2 + $0x30] sm:$0xff] %vm31, %v116
  %152 = vst.msk [vmem:[%s2 + $0x38] sm:$0xff] %vm31, %v119
  %153 = vst.msk [vmem:[%s2 + $0x40] sm:$0xff] %vm31, %v122
  %154 = vst.msk [vmem:[%s2 + $0x48] sm:$0xff] %vm31, %v125
  %155 = vst.msk [vmem:[%s2 + $0x50] sm:$0xff] %vm31, %v128
  %156 = vst.msk [vmem:[%s2 + $0x58] sm:$0xff] %vm31, %v131
  %157 = vst.msk [vmem:[%s2 + $0x60] sm:$0xff] %vm31, %v134
  %158 = vst.msk [vmem:[%s2 + $0x68] sm:$0xff] %vm31, %v137
  %159 = vst.msk [vmem:[%s2 + $0x70] sm:$0xff] %vm31, %v140
  %160 = vst.msk [vmem:[%s2 + $0x78] sm:$0xff] %vm31, %v143
  // Predicated region
  $region10: #{tpu_custom_call.1} parent=0 // pred_check
    _
  $region11: #{tpu_custom_call.1} parent=0 // pred_check_branch
    %162 = sbr.rel (0) target = $region13
  $region12: #{tpu_custom_call.1} parent=0 // pred_region
    _
  $region13: #{tpu_custom_call.1} parent=0 // pred_fallthru
    _
  // Predicated region
  $region14: #{tpu_custom_call.1} parent=0 // pred_check
    _
  $region15: #{tpu_custom_call.1} parent=0 // pred_check_branch
    %164 = sbr.rel (0) target = $region17
  $region16: #{tpu_custom_call.1} parent=0 // pred_region
    _
  $region17: #{tpu_custom_call.1} parent=0 // pred_fallthru
    _

</llo_original>
